<compile_context>
chip_gen: v5e
topology: v5e:2x2
jax: 0.10.0
libtpu: 0.0.40
codegen_flags: <defaults>
</compile_context>

<pallas_src>
import functools

import jax
import jax.numpy as jnp
from jax.experimental import pallas as pl
from jax.experimental.pallas import tpu as pltpu


_LN_EPS = 1e-5  # matches torch.nn.LayerNorm default


def _layer_norm(x, gamma, beta):
    mu = jnp.mean(x, axis=-1, keepdims=True)
    xc = x - mu
    var = jnp.mean(xc * xc, axis=-1, keepdims=True)
    return xc * jax.lax.rsqrt(var + _LN_EPS) * gamma + beta


def _encoder_layer_kernel(
    # ---- inputs -------------------------------------------------------
    x_ref,      # (1, S, D)  f32   activations of one batch element
    wqkv_ref,   # (D, 3D)    bf16  fused in_proj.weight.T (Q scale folded in)
    bqkv_ref,   # (1, 3D)    f32   fused in_proj bias     (Q scale folded in)
    wo_ref,     # (D, D)     bf16  out_proj.weight.T
    bo_ref,     # (1, D)     f32
    w1_ref,     # (D, Dff)   bf16  linear1.weight.T
    b1_ref,     # (1, Dff)   f32
    w2_ref,     # (Dff, D)   bf16  linear2.weight.T
    b2_ref,     # (1, D)     f32
    g1_ref,     # (1, D)     f32   norm1.weight
    be1_ref,    # (1, D)     f32   norm1.bias
    g2_ref,     # (1, D)     f32   norm2.weight
    be2_ref,    # (1, D)     f32   norm2.bias
    # ---- outputs ------------------------------------------------------
    o_ref,      # (1, S, D)
    *,
    nhead,
):
    cdt = wqkv_ref.dtype          # MXU compute dtype (bf16)
    x = x_ref[0]                  # (S, D) f32
    S, D = x.shape
    hd = D // nhead

    xc = x.astype(cdt)            # single bf16 cast of the activations

    # ---- fused QKV projection: one full-width (S,D)x(D,3D) MXU matmul ----
    qkv = jnp.dot(xc, wqkv_ref[...], preferred_element_type=jnp.float32)
    qkv = (qkv + bqkv_ref[0]).astype(cdt)        # one downcast of (S, 3D)
    q_all = qkv[:, :D]
    k_all = qkv[:, D:2 * D]
    v_all = qkv[:, 2 * D:]

    # ---- per-head attention (static unroll over a small head count) -----
    # Each head's context is kept as a value and concatenated along lanes,
    # so "concat heads + out_proj" is a single full-depth matmul below.
    ctx_heads = []
    for h in range(nhead):
        lo, hi = h * hd, (h + 1) * hd
        q = q_all[:, lo:hi]                      # (S, hd) bf16 (scaled)
        k = k_all[:, lo:hi]                      # (S, hd) bf16
        v = v_all[:, lo:hi]                      # (S, hd) bf16

        # scores = q @ k.T  (scale already folded into wqkv/bqkv)
        s = jax.lax.dot_general(
            q, k,
            dimension_numbers=(((1,), (1,)), ((), ())),
            preferred_element_type=jnp.float32)  # (S, S) f32

        # softmax in f32; divide goes to the EUP via approximate reciprocal
        s = s - jnp.max(s, axis=-1, keepdims=True)
        p = jnp.exp(s)
        p = p * pl.reciprocal(jnp.sum(p, axis=-1, keepdims=True), approx=True)

        ctx_heads.append(
            jnp.dot(p.astype(cdt), v,
                    preferred_element_type=jnp.float32).astype(cdt))

    ctx = jnp.concatenate(ctx_heads, axis=-1)    # (S, D) bf16

    # ---- "concat heads + out_proj" as one (S,D)x(D,D) matmul -------------
    attn = (jnp.dot(ctx, wo_ref[...], preferred_element_type=jnp.float32)
            + bo_ref[0])

    # ---- residual + LN1, FFN, residual + LN2 (dropouts = identity) -------
    src = x + attn
    src = _layer_norm(src, g1_ref[0], be1_ref[0])

    h1 = (jnp.dot(src.astype(cdt), w1_ref[...],
                  preferred_element_type=jnp.float32) + b1_ref[0])
    h1 = jnp.maximum(h1, 0.0)                    # ReLU
    ff = (jnp.dot(h1.astype(cdt), w2_ref[...],
                  preferred_element_type=jnp.float32) + b2_ref[0])

    src2 = src + ff
    o_ref[0] = _layer_norm(src2, g2_ref[0], be2_ref[0]).astype(o_ref.dtype)


def prepare_layer_params(params, nhead, compute_dtype=jnp.bfloat16):
    """One-off host-side re-packing of PyTorch-convention parameters."""
    wqkv = params["wqkv"]                    # (3D, D)  in_proj_weight
    bqkv = params["bqkv"].reshape(-1)        # (3D,)    in_proj_bias
    D = wqkv.shape[1]
    hd = D // nhead
    scale = 1.0 / (hd ** 0.5)

    # Fold the 1/sqrt(hd) attention scale into the Q third of the fused,
    # pre-transposed QKV weight / bias.
    col_scale = jnp.concatenate(
        [jnp.full((D,), scale, jnp.float32), jnp.ones((2 * D,), jnp.float32)])

    return {
        "wqkv": (wqkv.T * col_scale[None, :]).astype(compute_dtype),  # (D, 3D)
        "bqkv": (bqkv * col_scale).reshape(1, 3 * D).astype(jnp.float32),
        "wo":   params["wo"].T.astype(compute_dtype),                 # (D, D)
        "bo":   params["bo"].astype(jnp.float32),                     # (1, D)
        "w1":   params["w1"].T.astype(compute_dtype),                 # (D, Dff)
        "b1":   params["b1"].astype(jnp.float32),                     # (1, Dff)
        "w2":   params["w2"].T.astype(compute_dtype),                 # (Dff, D)
        "b2":   params["b2"].astype(jnp.float32),                     # (1, D)
        "g1":   params["g1"].astype(jnp.float32),
        "be1":  params["be1"].astype(jnp.float32),
        "g2":   params["g2"].astype(jnp.float32),
        "be2":  params["be2"].astype(jnp.float32),
    }


def _default_vmem_limit_bytes():
    """Per-generation scoped VMEM limit (3/4 of physical, with headroom)."""
    cap = 64 * 1024 * 1024  # conservative fallback (v7x physical VMEM)
    try:
        info = pltpu.get_tpu_info()
        cap = int(getattr(info, "vmem_capacity_bytes", cap) or cap)
    except Exception:
        pass
    return (cap * 3) // 4


def encoder_layer(x, kp, nhead, *, vmem_limit_bytes=None):
    """One EncoderLayer forward pass. x: (B, S, D) float32, kp = prepared params."""
    B, S, D = x.shape
    assert D % nhead == 0
    Dff = kp["w1"].shape[1]
    if vmem_limit_bytes is None:
        vmem_limit_bytes = _default_vmem_limit_bytes()

    # Constant block index: each weight is DMA'd once per pallas_call and
    # stays VMEM-resident across all grid (batch) steps.
    def const_spec(shape):
        return pl.BlockSpec(shape, lambda b: tuple(0 for _ in shape))

    grid_spec = pltpu.PrefetchScalarGridSpec(
        num_scalar_prefetch=0,
        grid=(B,),
        in_specs=[
            pl.BlockSpec((1, S, D), lambda b: (b, 0, 0)),   # x
            const_spec((D, 3 * D)),                         # fused QKV weight
            const_spec((1, 3 * D)),                         # fused QKV bias
            const_spec((D, D)),                             # out_proj.weight.T
            const_spec((1, D)),                             # out_proj bias
            const_spec((D, Dff)),                           # linear1.weight.T
            const_spec((1, Dff)),                           # linear1 bias
            const_spec((Dff, D)),                           # linear2.weight.T
            const_spec((1, D)),                             # linear2 bias
            const_spec((1, D)),                             # gamma1
            const_spec((1, D)),                             # beta1
            const_spec((1, D)),                             # gamma2
            const_spec((1, D)),                             # beta2
        ],
        out_specs=pl.BlockSpec((1, S, D), lambda b: (b, 0, 0)),
    )

    return pl.pallas_call(
        functools.partial(_encoder_layer_kernel, nhead=nhead),
        out_shape=jax.ShapeDtypeStruct((B, S, D), x.dtype),
        grid_spec=grid_spec,
        compiler_params=pltpu.CompilerParams(
            # NOTE: with B == 1 one megacore TC idles; add an S-tile parallel
            # axis for such configs if needed.
            dimension_semantics=("parallel",),
            vmem_limit_bytes=vmem_limit_bytes,
        ),
    )(
        x,
        kp["wqkv"], kp["bqkv"], kp["wo"], kp["bo"],
        kp["w1"], kp["b1"], kp["w2"], kp["b2"],
        kp["g1"], kp["be1"], kp["g2"], kp["be2"],
    )


def init_layer_params(key, d_model, d_ff):
    """Parameters in PyTorch storage convention (Linear weight = (out, in))."""
    ks = jax.random.split(key, 6)
    s_in = 1.0 / (d_model ** 0.5)
    s_ff = 1.0 / (d_ff ** 0.5)
    return {
        "wqkv": jax.random.uniform(ks[0], (3 * d_model, d_model),
                                   jnp.float32, -s_in, s_in),
        "bqkv": jnp.zeros((1, 3 * d_model), jnp.float32),
        "wo":   jax.random.uniform(ks[1], (d_model, d_model),
                                   jnp.float32, -s_in, s_in),
        "bo":   jnp.zeros((1, d_model), jnp.float32),
        "w1":   jax.random.uniform(ks[2], (d_ff, d_model),
                                   jnp.float32, -s_in, s_in),
        "b1":   jax.random.uniform(ks[3], (1, d_ff),
                                   jnp.float32, -s_in, s_in),
        "w2":   jax.random.uniform(ks[4], (d_model, d_ff),
                                   jnp.float32, -s_ff, s_ff),
        "b2":   jax.random.uniform(ks[5], (1, d_model),
                                   jnp.float32, -s_ff, s_ff),
        "g1":   jnp.ones((1, d_model), jnp.float32),
        "be1":  jnp.zeros((1, d_model), jnp.float32),
        "g2":   jnp.ones((1, d_model), jnp.float32),
        "be2":  jnp.zeros((1, d_model), jnp.float32),
    }


def transformer_encoder(x, layer_params, nhead, compute_dtype=jnp.bfloat16):
    out = x
    for p in layer_params:
        kp = prepare_layer_params(p, nhead, compute_dtype)
        out = encoder_layer(out, kp, nhead)
    return out


# ----------------------------- pure-JAX reference ---------------------------
def _reference_layer(x, p, nhead):
    B, S, D = x.shape
    hd = D // nhead
    scale = 1.0 / (hd ** 0.5)
    wqkv, bqkv = p["wqkv"], p["bqkv"].reshape(-1)
    qkv = x @ wqkv.T + bqkv
    q, k, v = qkv[..., :D], qkv[..., D:2 * D], qkv[..., 2 * D:]

    def split(t):
        return t.reshape(B, S, nhead, hd).transpose(0, 2, 1, 3)  # (B, H, S, hd)

    q, k, v = split(q) * scale, split(k), split(v)
    s = jnp.einsum("bhqd,bhkd->bhqk", q, k)
    pr = jax.nn.softmax(s, axis=-1)
    ctx = jnp.einsum("bhqk,bhkd->bhqd", pr, v)
    ctx = ctx.transpose(0, 2, 1, 3).reshape(B, S, D)
    attn = ctx @ p["wo"].T + p["bo"][0]

    src = x + attn
    src = _layer_norm(src, p["g1"][0], p["be1"][0])
    h1 = jnp.maximum(src @ p["w1"].T + p["b1"][0], 0.0)
    ff = h1 @ p["w2"].T + p["b2"][0]
    src2 = src + ff
    return _layer_norm(src2, p["g2"][0], p["be2"][0])


if __name__ == "__main__":
    # Small, shape-consistent config: d_model=32, nhead=4, num_layers=2,
    # dim_feedforward=64, batch=2, seq=8.  (Realistic configs should use
    # D / hd / Dff multiples of 128 for lane-dense loads/stores.)
    B, S, D, H, DFF, L = 2, 8, 32, 4, 64, 2

    key = jax.random.PRNGKey(0)
    kx, *kl = jax.random.split(key, L + 1)

    x = jax.random.normal(kx, (B, S, D), dtype=jnp.float32)
    layer_params = [init_layer_params(k, D, DFF) for k in kl]

    out = transformer_encoder(x, layer_params, H)
    out = jax.block_until_ready(out)
    assert out.shape == (B, S, D)
    assert bool(jnp.all(jnp.isfinite(out)))

    # correctness check vs. pure-JAX f32 reference (tolerance covers bf16
    # matmuls and the approximate-reciprocal softmax denominator)
    ref = x
    for p in layer_params:
        ref = _reference_layer(ref, p, H)
    err = float(jnp.max(jnp.abs(out - ref)))
    assert err < 5e-2, f"max abs diff vs reference too large: {err}"

    print("KERNEL_OK")
</pallas_src>

<mosaic_0001>
module attributes {stable_mosaic.version = 11 : i64} {
  func.func @_encoder_layer_kernel(%arg0: i32, %arg1: memref<1x8x32xf32, #tpu.memory_space<vmem>>, %arg2: memref<32x96xbf16, #tpu.memory_space<vmem>>, %arg3: memref<1x96xf32, #tpu.memory_space<vmem>>, %arg4: memref<32x32xbf16, #tpu.memory_space<vmem>>, %arg5: memref<1x32xf32, #tpu.memory_space<vmem>>, %arg6: memref<32x64xbf16, #tpu.memory_space<vmem>>, %arg7: memref<1x64xf32, #tpu.memory_space<vmem>>, %arg8: memref<64x32xbf16, #tpu.memory_space<vmem>>, %arg9: memref<1x32xf32, #tpu.memory_space<vmem>>, %arg10: memref<1x32xf32, #tpu.memory_space<vmem>>, %arg11: memref<1x32xf32, #tpu.memory_space<vmem>>, %arg12: memref<1x32xf32, #tpu.memory_space<vmem>>, %arg13: memref<1x32xf32, #tpu.memory_space<vmem>>, %arg14: memref<1x8x32xf32, #tpu.memory_space<vmem>>) attributes {dimension_semantics = [#tpu.dimension_semantics<parallel>], iteration_bounds = array<i64: 2>, scalar_prefetch = 0 : i64, scratch_operands = 0 : i64, tpu.core_type = #tpu.core_type<tc>, window_params = [{transform_indices = @transform_0, window_bounds = array<i64: 1, 8, 32>}, {pipeline_mode = #tpu.pipeline_mode<synchronous>, transform_indices = @transform_1, window_bounds = array<i64: 32, 96>}, {pipeline_mode = #tpu.pipeline_mode<synchronous>, transform_indices = @transform_2, window_bounds = array<i64: 1, 96>}, {pipeline_mode = #tpu.pipeline_mode<synchronous>, transform_indices = @transform_3, window_bounds = array<i64: 32, 32>}, {pipeline_mode = #tpu.pipeline_mode<synchronous>, transform_indices = @transform_4, window_bounds = array<i64: 1, 32>}, {pipeline_mode = #tpu.pipeline_mode<synchronous>, transform_indices = @transform_5, window_bounds = array<i64: 32, 64>}, {pipeline_mode = #tpu.pipeline_mode<synchronous>, transform_indices = @transform_6, window_bounds = array<i64: 1, 64>}, {pipeline_mode = #tpu.pipeline_mode<synchronous>, transform_indices = @transform_7, window_bounds = array<i64: 64, 32>}, {pipeline_mode = #tpu.pipeline_mode<synchronous>, transform_indices = @transform_8, window_bounds = array<i64: 1, 32>}, {pipeline_mode = #tpu.pipeline_mode<synchronous>, transform_indices = @transform_9, window_bounds = array<i64: 1, 32>}, {pipeline_mode = #tpu.pipeline_mode<synchronous>, transform_indices = @transform_10, window_bounds = array<i64: 1, 32>}, {pipeline_mode = #tpu.pipeline_mode<synchronous>, transform_indices = @transform_11, window_bounds = array<i64: 1, 32>}, {pipeline_mode = #tpu.pipeline_mode<synchronous>, transform_indices = @transform_12, window_bounds = array<i64: 1, 32>}, {transform_indices = @transform_13, window_bounds = array<i64: 1, 8, 32>}]} {
    %c0 = arith.constant 0 : index
    %c0_0 = arith.constant 0 : index
    %c0_1 = arith.constant 0 : index
    %0 = vector.load %arg1[%c0, %c0_0, %c0_1] : memref<1x8x32xf32, #tpu.memory_space<vmem>>, vector<1x8x32xf32>
    %1 = vector.shape_cast %0 : vector<1x8x32xf32> to vector<8x32xf32>
    %2 = arith.truncf %1 : vector<8x32xf32> to vector<8x32xbf16>
    %c0_2 = arith.constant 0 : index
    %c0_3 = arith.constant 0 : index
    %3 = vector.load %arg2[%c0_2, %c0_3] : memref<32x96xbf16, #tpu.memory_space<vmem>>, vector<32x96xbf16>
    %cst = arith.constant dense<0.000000e+00> : vector<8x96xf32>
    %4 = tpu.matmul %2, %3, %cst {dimension_numbers = #tpu.dot_dimension_numbers<[1], [0], [0], [1], [0, 0, 1, 1], [], []>} : vector<8x32xbf16>, vector<32x96xbf16>, vector<8x96xf32> -> vector<8x96xf32>
    %c0_4 = arith.constant 0 : index
    %c0_5 = arith.constant 0 : index
    %5 = vector.load %arg3[%c0_4, %c0_5] : memref<1x96xf32, #tpu.memory_space<vmem>>, vector<1x96xf32>
    %6 = vector.shape_cast %5 : vector<1x96xf32> to vector<96xf32>
    %7 = vector.shape_cast %6 : vector<96xf32> to vector<1x96xf32>
    %8 = vector.broadcast %7 : vector<1x96xf32> to vector<8x96xf32>
    %9 = arith.addf %4, %8 : vector<8x96xf32>
    %10 = arith.truncf %9 : vector<8x96xf32> to vector<8x96xbf16>
    %11 = vector.extract_strided_slice %10 {offsets = [0, 0], sizes = [8, 32], strides = [1, 1]} : vector<8x96xbf16> to vector<8x32xbf16>
    %12 = vector.extract_strided_slice %10 {offsets = [0, 32], sizes = [8, 32], strides = [1, 1]} : vector<8x96xbf16> to vector<8x32xbf16>
    %13 = vector.extract_strided_slice %10 {offsets = [0, 64], sizes = [8, 32], strides = [1, 1]} : vector<8x96xbf16> to vector<8x32xbf16>
    %14 = vector.extract_strided_slice %11 {offsets = [0, 0], sizes = [8, 8], strides = [1, 1]} : vector<8x32xbf16> to vector<8x8xbf16>
    %15 = vector.extract_strided_slice %12 {offsets = [0, 0], sizes = [8, 8], strides = [1, 1]} : vector<8x32xbf16> to vector<8x8xbf16>
    %16 = vector.extract_strided_slice %13 {offsets = [0, 0], sizes = [8, 8], strides = [1, 1]} : vector<8x32xbf16> to vector<8x8xbf16>
    %cst_6 = arith.constant dense<0.000000e+00> : vector<8x8xf32>
    %17 = tpu.matmul %14, %15, %cst_6 {dimension_numbers = #tpu.dot_dimension_numbers<[1], [1], [0], [0], [0, 0, 1, 0], [], []>} : vector<8x8xbf16>, vector<8x8xbf16>, vector<8x8xf32> -> vector<8x8xf32>
    %cst_7 = arith.constant dense<0xFF800000> : vector<8xf32>
    %18 = vector.multi_reduction <maximumf>, %17, %cst_7 [1] : vector<8x8xf32> to vector<8xf32>
    %19 = vector.shape_cast %18 : vector<8xf32> to vector<8x1xf32>
    %20 = vector.broadcast %19 : vector<8x1xf32> to vector<8x8xf32>
    %21 = arith.subf %17, %20 : vector<8x8xf32>
    %22 = math.exp %21 : vector<8x8xf32>
    %cst_8 = arith.constant dense<0.000000e+00> : vector<8xf32>
    %23 = vector.multi_reduction <add>, %22, %cst_8 [1] : vector<8x8xf32> to vector<8xf32>
    %24 = vector.shape_cast %23 : vector<8xf32> to vector<8x1xf32>
    %25 = tpu.reciprocal %24 {approx = true} : vector<8x1xf32> -> vector<8x1xf32>
    %26 = vector.broadcast %25 : vector<8x1xf32> to vector<8x8xf32>
    %27 = arith.mulf %22, %26 : vector<8x8xf32>
    %28 = arith.truncf %27 : vector<8x8xf32> to vector<8x8xbf16>
    %cst_9 = arith.constant dense<0.000000e+00> : vector<8x8xf32>
    %29 = tpu.matmul %28, %16, %cst_9 {dimension_numbers = #tpu.dot_dimension_numbers<[1], [0], [0], [1], [0, 0, 1, 1], [], []>} : vector<8x8xbf16>, vector<8x8xbf16>, vector<8x8xf32> -> vector<8x8xf32>
    %30 = arith.truncf %29 : vector<8x8xf32> to vector<8x8xbf16>
    %31 = vector.extract_strided_slice %11 {offsets = [0, 8], sizes = [8, 8], strides = [1, 1]} : vector<8x32xbf16> to vector<8x8xbf16>
    %32 = vector.extract_strided_slice %12 {offsets = [0, 8], sizes = [8, 8], strides = [1, 1]} : vector<8x32xbf16> to vector<8x8xbf16>
    %33 = vector.extract_strided_slice %13 {offsets = [0, 8], sizes = [8, 8], strides = [1, 1]} : vector<8x32xbf16> to vector<8x8xbf16>
    %cst_10 = arith.constant dense<0.000000e+00> : vector<8x8xf32>
    %34 = tpu.matmul %31, %32, %cst_10 {dimension_numbers = #tpu.dot_dimension_numbers<[1], [1], [0], [0], [0, 0, 1, 0], [], []>} : vector<8x8xbf16>, vector<8x8xbf16>, vector<8x8xf32> -> vector<8x8xf32>
    %cst_11 = arith.constant dense<0xFF800000> : vector<8xf32>
    %35 = vector.multi_reduction <maximumf>, %34, %cst_11 [1] : vector<8x8xf32> to vector<8xf32>
    %36 = vector.shape_cast %35 : vector<8xf32> to vector<8x1xf32>
    %37 = vector.broadcast %36 : vector<8x1xf32> to vector<8x8xf32>
    %38 = arith.subf %34, %37 : vector<8x8xf32>
    %39 = math.exp %38 : vector<8x8xf32>
    %cst_12 = arith.constant dense<0.000000e+00> : vector<8xf32>
    %40 = vector.multi_reduction <add>, %39, %cst_12 [1] : vector<8x8xf32> to vector<8xf32>
    %41 = vector.shape_cast %40 : vector<8xf32> to vector<8x1xf32>
    %42 = tpu.reciprocal %41 {approx = true} : vector<8x1xf32> -> vector<8x1xf32>
    %43 = vector.broadcast %42 : vector<8x1xf32> to vector<8x8xf32>
    %44 = arith.mulf %39, %43 : vector<8x8xf32>
    %45 = arith.truncf %44 : vector<8x8xf32> to vector<8x8xbf16>
    %cst_13 = arith.constant dense<0.000000e+00> : vector<8x8xf32>
    %46 = tpu.matmul %45, %33, %cst_13 {dimension_numbers = #tpu.dot_dimension_numbers<[1], [0], [0], [1], [0, 0, 1, 1], [], []>} : vector<8x8xbf16>, vector<8x8xbf16>, vector<8x8xf32> -> vector<8x8xf32>
    %47 = arith.truncf %46 : vector<8x8xf32> to vector<8x8xbf16>
    %48 = vector.extract_strided_slice %11 {offsets = [0, 16], sizes = [8, 8], strides = [1, 1]} : vector<8x32xbf16> to vector<8x8xbf16>
    %49 = vector.extract_strided_slice %12 {offsets = [0, 16], sizes = [8, 8], strides = [1, 1]} : vector<8x32xbf16> to vector<8x8xbf16>
    %50 = vector.extract_strided_slice %13 {offsets = [0, 16], sizes = [8, 8], strides = [1, 1]} : vector<8x32xbf16> to vector<8x8xbf16>
    %cst_14 = arith.constant dense<0.000000e+00> : vector<8x8xf32>
    %51 = tpu.matmul %48, %49, %cst_14 {dimension_numbers = #tpu.dot_dimension_numbers<[1], [1], [0], [0], [0, 0, 1, 0], [], []>} : vector<8x8xbf16>, vector<8x8xbf16>, vector<8x8xf32> -> vector<8x8xf32>
    %cst_15 = arith.constant dense<0xFF800000> : vector<8xf32>
    %52 = vector.multi_reduction <maximumf>, %51, %cst_15 [1] : vector<8x8xf32> to vector<8xf32>
    %53 = vector.shape_cast %52 : vector<8xf32> to vector<8x1xf32>
    %54 = vector.broadcast %53 : vector<8x1xf32> to vector<8x8xf32>
    %55 = arith.subf %51, %54 : vector<8x8xf32>
    %56 = math.exp %55 : vector<8x8xf32>
    %cst_16 = arith.constant dense<0.000000e+00> : vector<8xf32>
    %57 = vector.multi_reduction <add>, %56, %cst_16 [1] : vector<8x8xf32> to vector<8xf32>
    %58 = vector.shape_cast %57 : vector<8xf32> to vector<8x1xf32>
    %59 = tpu.reciprocal %58 {approx = true} : vector<8x1xf32> -> vector<8x1xf32>
    %60 = vector.broadcast %59 : vector<8x1xf32> to vector<8x8xf32>
    %61 = arith.mulf %56, %60 : vector<8x8xf32>
    %62 = arith.truncf %61 : vector<8x8xf32> to vector<8x8xbf16>
    %cst_17 = arith.constant dense<0.000000e+00> : vector<8x8xf32>
    %63 = tpu.matmul %62, %50, %cst_17 {dimension_numbers = #tpu.dot_dimension_numbers<[1], [0], [0], [1], [0, 0, 1, 1], [], []>} : vector<8x8xbf16>, vector<8x8xbf16>, vector<8x8xf32> -> vector<8x8xf32>
    %64 = arith.truncf %63 : vector<8x8xf32> to vector<8x8xbf16>
    %65 = vector.extract_strided_slice %11 {offsets = [0, 24], sizes = [8, 8], strides = [1, 1]} : vector<8x32xbf16> to vector<8x8xbf16>
    %66 = vector.extract_strided_slice %12 {offsets = [0, 24], sizes = [8, 8], strides = [1, 1]} : vector<8x32xbf16> to vector<8x8xbf16>
    %67 = vector.extract_strided_slice %13 {offsets = [0, 24], sizes = [8, 8], strides = [1, 1]} : vector<8x32xbf16> to vector<8x8xbf16>
    %cst_18 = arith.constant dense<0.000000e+00> : vector<8x8xf32>
    %68 = tpu.matmul %65, %66, %cst_18 {dimension_numbers = #tpu.dot_dimension_numbers<[1], [1], [0], [0], [0, 0, 1, 0], [], []>} : vector<8x8xbf16>, vector<8x8xbf16>, vector<8x8xf32> -> vector<8x8xf32>
    %cst_19 = arith.constant dense<0xFF800000> : vector<8xf32>
    %69 = vector.multi_reduction <maximumf>, %68, %cst_19 [1] : vector<8x8xf32> to vector<8xf32>
    %70 = vector.shape_cast %69 : vector<8xf32> to vector<8x1xf32>
    %71 = vector.broadcast %70 : vector<8x1xf32> to vector<8x8xf32>
    %72 = arith.subf %68, %71 : vector<8x8xf32>
    %73 = math.exp %72 : vector<8x8xf32>
    %cst_20 = arith.constant dense<0.000000e+00> : vector<8xf32>
    %74 = vector.multi_reduction <add>, %73, %cst_20 [1] : vector<8x8xf32> to vector<8xf32>
    %75 = vector.shape_cast %74 : vector<8xf32> to vector<8x1xf32>
    %76 = tpu.reciprocal %75 {approx = true} : vector<8x1xf32> -> vector<8x1xf32>
    %77 = vector.broadcast %76 : vector<8x1xf32> to vector<8x8xf32>
    %78 = arith.mulf %73, %77 : vector<8x8xf32>
    %79 = arith.truncf %78 : vector<8x8xf32> to vector<8x8xbf16>
    %cst_21 = arith.constant dense<0.000000e+00> : vector<8x8xf32>
    %80 = tpu.matmul %79, %67, %cst_21 {dimension_numbers = #tpu.dot_dimension_numbers<[1], [0], [0], [1], [0, 0, 1, 1], [], []>} : vector<8x8xbf16>, vector<8x8xbf16>, vector<8x8xf32> -> vector<8x8xf32>
    %81 = arith.truncf %80 : vector<8x8xf32> to vector<8x8xbf16>
    %82 = tpu.concatenate %30, %47, %64, %81 in 1 : vector<8x8xbf16>, vector<8x8xbf16>, vector<8x8xbf16>, vector<8x8xbf16> -> vector<8x32xbf16>
    %c0_22 = arith.constant 0 : index
    %c0_23 = arith.constant 0 : index
    %83 = vector.load %arg4[%c0_22, %c0_23] : memref<32x32xbf16, #tpu.memory_space<vmem>>, vector<32x32xbf16>
    %cst_24 = arith.constant dense<0.000000e+00> : vector<8x32xf32>
    %84 = tpu.matmul %82, %83, %cst_24 {dimension_numbers = #tpu.dot_dimension_numbers<[1], [0], [0], [1], [0, 0, 1, 1], [], []>} : vector<8x32xbf16>, vector<32x32xbf16>, vector<8x32xf32> -> vector<8x32xf32>
    %c0_25 = arith.constant 0 : index
    %c0_26 = arith.constant 0 : index
    %85 = vector.load %arg5[%c0_25, %c0_26] : memref<1x32xf32, #tpu.memory_space<vmem>>, vector<1x32xf32>
    %86 = vector.shape_cast %85 : vector<1x32xf32> to vector<32xf32>
    %87 = vector.shape_cast %86 : vector<32xf32> to vector<1x32xf32>
    %88 = vector.broadcast %87 : vector<1x32xf32> to vector<8x32xf32>
    %89 = arith.addf %84, %88 : vector<8x32xf32>
    %90 = arith.addf %1, %89 : vector<8x32xf32>
    %c0_27 = arith.constant 0 : index
    %c0_28 = arith.constant 0 : index
    %91 = vector.load %arg10[%c0_27, %c0_28] : memref<1x32xf32, #tpu.memory_space<vmem>>, vector<1x32xf32>
    %92 = vector.shape_cast %91 : vector<1x32xf32> to vector<32xf32>
    %c0_29 = arith.constant 0 : index
    %c0_30 = arith.constant 0 : index
    %93 = vector.load %arg11[%c0_29, %c0_30] : memref<1x32xf32, #tpu.memory_space<vmem>>, vector<1x32xf32>
    %94 = vector.shape_cast %93 : vector<1x32xf32> to vector<32xf32>
    %cst_31 = arith.constant dense<0.000000e+00> : vector<8xf32>
    %95 = vector.multi_reduction <add>, %90, %cst_31 [1] : vector<8x32xf32> to vector<8xf32>
    %96 = vector.shape_cast %95 : vector<8xf32> to vector<8x1xf32>
    %cst_32 = arith.constant 3.200000e+01 : f32
    %97 = vector.broadcast %cst_32 : f32 to vector<8x1xf32>
    %98 = arith.divf %96, %97 : vector<8x1xf32>
    %99 = vector.broadcast %98 : vector<8x1xf32> to vector<8x32xf32>
    %100 = arith.subf %90, %99 : vector<8x32xf32>
    %101 = arith.mulf %100, %100 : vector<8x32xf32>
    %cst_33 = arith.constant dense<0.000000e+00> : vector<8xf32>
    %102 = vector.multi_reduction <add>, %101, %cst_33 [1] : vector<8x32xf32> to vector<8xf32>
    %103 = vector.shape_cast %102 : vector<8xf32> to vector<8x1xf32>
    %cst_34 = arith.constant 3.200000e+01 : f32
    %104 = vector.broadcast %cst_34 : f32 to vector<8x1xf32>
    %105 = arith.divf %103, %104 : vector<8x1xf32>
    %cst_35 = arith.constant 9.99999974E-6 : f32
    %106 = vector.broadcast %cst_35 : f32 to vector<8x1xf32>
    %107 = arith.addf %105, %106 : vector<8x1xf32>
    %108 = math.rsqrt %107 : vector<8x1xf32>
    %109 = vector.broadcast %108 : vector<8x1xf32> to vector<8x32xf32>
    %110 = arith.mulf %100, %109 : vector<8x32xf32>
    %111 = vector.shape_cast %92 : vector<32xf32> to vector<1x32xf32>
    %112 = vector.broadcast %111 : vector<1x32xf32> to vector<8x32xf32>
    %113 = arith.mulf %110, %112 : vector<8x32xf32>
    %114 = vector.shape_cast %94 : vector<32xf32> to vector<1x32xf32>
    %115 = vector.broadcast %114 : vector<1x32xf32> to vector<8x32xf32>
    %116 = arith.addf %113, %115 : vector<8x32xf32>
    %117 = arith.truncf %116 : vector<8x32xf32> to vector<8x32xbf16>
    %c0_36 = arith.constant 0 : index
    %c0_37 = arith.constant 0 : index
    %118 = vector.load %arg6[%c0_36, %c0_37] : memref<32x64xbf16, #tpu.memory_space<vmem>>, vector<32x64xbf16>
    %cst_38 = arith.constant dense<0.000000e+00> : vector<8x64xf32>
    %119 = tpu.matmul %117, %118, %cst_38 {dimension_numbers = #tpu.dot_dimension_numbers<[1], [0], [0], [1], [0, 0, 1, 1], [], []>} : vector<8x32xbf16>, vector<32x64xbf16>, vector<8x64xf32> -> vector<8x64xf32>
    %c0_39 = arith.constant 0 : index
    %c0_40 = arith.constant 0 : index
    %120 = vector.load %arg7[%c0_39, %c0_40] : memref<1x64xf32, #tpu.memory_space<vmem>>, vector<1x64xf32>
    %121 = vector.shape_cast %120 : vector<1x64xf32> to vector<64xf32>
    %122 = vector.shape_cast %121 : vector<64xf32> to vector<1x64xf32>
    %123 = vector.broadcast %122 : vector<1x64xf32> to vector<8x64xf32>
    %124 = arith.addf %119, %123 : vector<8x64xf32>
    %cst_41 = arith.constant 0.000000e+00 : f32
    %125 = vector.broadcast %cst_41 : f32 to vector<8x64xf32>
    %126 = arith.maximumf %124, %125 : vector<8x64xf32>
    %127 = arith.truncf %126 : vector<8x64xf32> to vector<8x64xbf16>
    %c0_42 = arith.constant 0 : index
    %c0_43 = arith.constant 0 : index
    %128 = vector.load %arg8[%c0_42, %c0_43] : memref<64x32xbf16, #tpu.memory_space<vmem>>, vector<64x32xbf16>
    %cst_44 = arith.constant dense<0.000000e+00> : vector<8x32xf32>
    %129 = tpu.matmul %127, %128, %cst_44 {dimension_numbers = #tpu.dot_dimension_numbers<[1], [0], [0], [1], [0, 0, 1, 1], [], []>} : vector<8x64xbf16>, vector<64x32xbf16>, vector<8x32xf32> -> vector<8x32xf32>
    %c0_45 = arith.constant 0 : index
    %c0_46 = arith.constant 0 : index
    %130 = vector.load %arg9[%c0_45, %c0_46] : memref<1x32xf32, #tpu.memory_space<vmem>>, vector<1x32xf32>
    %131 = vector.shape_cast %130 : vector<1x32xf32> to vector<32xf32>
    %132 = vector.shape_cast %131 : vector<32xf32> to vector<1x32xf32>
    %133 = vector.broadcast %132 : vector<1x32xf32> to vector<8x32xf32>
    %134 = arith.addf %129, %133 : vector<8x32xf32>
    %135 = arith.addf %116, %134 : vector<8x32xf32>
    %c0_47 = arith.constant 0 : index
    %c0_48 = arith.constant 0 : index
    %136 = vector.load %arg12[%c0_47, %c0_48] : memref<1x32xf32, #tpu.memory_space<vmem>>, vector<1x32xf32>
    %137 = vector.shape_cast %136 : vector<1x32xf32> to vector<32xf32>
    %c0_49 = arith.constant 0 : index
    %c0_50 = arith.constant 0 : index
    %138 = vector.load %arg13[%c0_49, %c0_50] : memref<1x32xf32, #tpu.memory_space<vmem>>, vector<1x32xf32>
    %139 = vector.shape_cast %138 : vector<1x32xf32> to vector<32xf32>
    %cst_51 = arith.constant dense<0.000000e+00> : vector<8xf32>
    %140 = vector.multi_reduction <add>, %135, %cst_51 [1] : vector<8x32xf32> to vector<8xf32>
    %141 = vector.shape_cast %140 : vector<8xf32> to vector<8x1xf32>
    %cst_52 = arith.constant 3.200000e+01 : f32
    %142 = vector.broadcast %cst_52 : f32 to vector<8x1xf32>
    %143 = arith.divf %141, %142 : vector<8x1xf32>
    %144 = vector.broadcast %143 : vector<8x1xf32> to vector<8x32xf32>
    %145 = arith.subf %135, %144 : vector<8x32xf32>
    %146 = arith.mulf %145, %145 : vector<8x32xf32>
    %cst_53 = arith.constant dense<0.000000e+00> : vector<8xf32>
    %147 = vector.multi_reduction <add>, %146, %cst_53 [1] : vector<8x32xf32> to vector<8xf32>
    %148 = vector.shape_cast %147 : vector<8xf32> to vector<8x1xf32>
    %cst_54 = arith.constant 3.200000e+01 : f32
    %149 = vector.broadcast %cst_54 : f32 to vector<8x1xf32>
    %150 = arith.divf %148, %149 : vector<8x1xf32>
    %cst_55 = arith.constant 9.99999974E-6 : f32
    %151 = vector.broadcast %cst_55 : f32 to vector<8x1xf32>
    %152 = arith.addf %150, %151 : vector<8x1xf32>
    %153 = math.rsqrt %152 : vector<8x1xf32>
    %154 = vector.broadcast %153 : vector<8x1xf32> to vector<8x32xf32>
    %155 = arith.mulf %145, %154 : vector<8x32xf32>
    %156 = vector.shape_cast %137 : vector<32xf32> to vector<1x32xf32>
    %157 = vector.broadcast %156 : vector<1x32xf32> to vector<8x32xf32>
    %158 = arith.mulf %155, %157 : vector<8x32xf32>
    %159 = vector.shape_cast %139 : vector<32xf32> to vector<1x32xf32>
    %160 = vector.broadcast %159 : vector<1x32xf32> to vector<8x32xf32>
    %161 = arith.addf %158, %160 : vector<8x32xf32>
    %c0_56 = arith.constant 0 : index
    %c0_57 = arith.constant 0 : index
    %c0_58 = arith.constant 0 : index
    %162 = vector.load %arg14[%c0_56, %c0_57, %c0_58] : memref<1x8x32xf32, #tpu.memory_space<vmem>>, vector<1x8x32xf32>
    %163 = vector.shape_cast %162 : vector<1x8x32xf32> to vector<8x32xf32>
    %164 = vector.shape_cast %161 : vector<8x32xf32> to vector<1x8x32xf32>
    tpu.vector_store %arg14[%c0_56, %c0_57, %c0_58], %164 {strides = array<i32>} : memref<1x8x32xf32, #tpu.memory_space<vmem>>, vector<1x8x32xf32>,
    return
  }
  func.func @transform_0(%arg0: i32) -> (i32, i32, i32) {
    %c0_i32 = arith.constant 0 : i32
    %c0_i32_0 = arith.constant 0 : i32
    %c0_i32_1 = arith.constant 0 : i32
    return %arg0, %c0_i32, %c0_i32_0 : i32, i32, i32
  }
  func.func @transform_1(%arg0: i32) -> (i32, i32) {
    %c0_i32 = arith.constant 0 : i32
    %c0_i32_0 = arith.constant 0 : i32
    %c0_i32_1 = arith.constant 0 : i32
    return %c0_i32, %c0_i32_0 : i32, i32
  }
  func.func @transform_2(%arg0: i32) -> (i32, i32) {
    %c0_i32 = arith.constant 0 : i32
    %c0_i32_0 = arith.constant 0 : i32
    %c0_i32_1 = arith.constant 0 : i32
    return %c0_i32, %c0_i32_0 : i32, i32
  }
  func.func @transform_3(%arg0: i32) -> (i32, i32) {
    %c0_i32 = arith.constant 0 : i32
    %c0_i32_0 = arith.constant 0 : i32
    %c0_i32_1 = arith.constant 0 : i32
    return %c0_i32, %c0_i32_0 : i32, i32
  }
  func.func @transform_4(%arg0: i32) -> (i32, i32) {
    %c0_i32 = arith.constant 0 : i32
    %c0_i32_0 = arith.constant 0 : i32
    %c0_i32_1 = arith.constant 0 : i32
    return %c0_i32, %c0_i32_0 : i32, i32
  }
  func.func @transform_5(%arg0: i32) -> (i32, i32) {
    %c0_i32 = arith.constant 0 : i32
    %c0_i32_0 = arith.constant 0 : i32
    %c0_i32_1 = arith.constant 0 : i32
    return %c0_i32, %c0_i32_0 : i32, i32
  }
  func.func @transform_6(%arg0: i32) -> (i32, i32) {
    %c0_i32 = arith.constant 0 : i32
    %c0_i32_0 = arith.constant 0 : i32
    %c0_i32_1 = arith.constant 0 : i32
    return %c0_i32, %c0_i32_0 : i32, i32
  }
  func.func @transform_7(%arg0: i32) -> (i32, i32) {
    %c0_i32 = arith.constant 0 : i32
    %c0_i32_0 = arith.constant 0 : i32
    %c0_i32_1 = arith.constant 0 : i32
    return %c0_i32, %c0_i32_0 : i32, i32
  }
  func.func @transform_8(%arg0: i32) -> (i32, i32) {
    %c0_i32 = arith.constant 0 : i32
    %c0_i32_0 = arith.constant 0 : i32
    %c0_i32_1 = arith.constant 0 : i32
    return %c0_i32, %c0_i32_0 : i32, i32
  }
  func.func @transform_9(%arg0: i32) -> (i32, i32) {
    %c0_i32 = arith.constant 0 : i32
    %c0_i32_0 = arith.constant 0 : i32
    %c0_i32_1 = arith.constant 0 : i32
    return %c0_i32, %c0_i32_0 : i32, i32
  }
  func.func @transform_10(%arg0: i32) -> (i32, i32) {
    %c0_i32 = arith.constant 0 : i32
    %c0_i32_0 = arith.constant 0 : i32
    %c0_i32_1 = arith.constant 0 : i32
    return %c0_i32, %c0_i32_0 : i32, i32
  }
  func.func @transform_11(%arg0: i32) -> (i32, i32) {
    %c0_i32 = arith.constant 0 : i32
    %c0_i32_0 = arith.constant 0 : i32
    %c0_i32_1 = arith.constant 0 : i32
    return %c0_i32, %c0_i32_0 : i32, i32
  }
  func.func @transform_12(%arg0: i32) -> (i32, i32) {
    %c0_i32 = arith.constant 0 : i32
    %c0_i32_0 = arith.constant 0 : i32
    %c0_i32_1 = arith.constant 0 : i32
    return %c0_i32, %c0_i32_0 : i32, i32
  }
  func.func @transform_13(%arg0: i32) -> (i32, i32, i32) {
    %c0_i32 = arith.constant 0 : i32
    %c0_i32_0 = arith.constant 0 : i32
    %c0_i32_1 = arith.constant 0 : i32
    return %arg0, %c0_i32, %c0_i32_0 : i32, i32, i32
  }
}

</mosaic_0001>

<llo_original>
// kernel: tpu_custom_call.1
$region0: #{tpu_custom_call.1}
  #allocation0 [shape = 'u32[]', space=smem, size = 0x4, offset = 0x4, fixed_abs, tag = 'smem constant byte address 0x4 - core index']
  #allocation1 [shape = 'u32[72,128]{1,0:T(1,128)}', space=vmem, size = 0x9000, scoped, tag = 'internal scratch']
  %s0 = inlined_call_operand.vmem [shape: f32[2,8,32], index: 0, kind: input, shape index: {}]
  %s1 = inlined_call_operand.vmem [shape: bf16[32,96], index: 1, kind: input, shape index: {}]
  %s2 = inlined_call_operand.vmem [shape: f32[1,96], index: 2, kind: input, shape index: {}]
  %s3 = inlined_call_operand.vmem [shape: bf16[32,32], index: 3, kind: input, shape index: {}]
  %s4 = inlined_call_operand.vmem [shape: f32[1,32], index: 4, kind: input, shape index: {}]
  %s5 = inlined_call_operand.hbm [shape: bf16[32,64], index: 5, kind: input, shape index: {}]
  %s6 = inlined_call_operand.vmem [shape: f32[1,64], index: 6, kind: input, shape index: {}]
  %s7 = inlined_call_operand.vmem [shape: bf16[64,32], index: 7, kind: input, shape index: {}]
  %s8 = inlined_call_operand.vmem [shape: f32[1,32], index: 8, kind: input, shape index: {}]
  %s9 = inlined_call_operand.vmem [shape: f32[1,32], index: 9, kind: input, shape index: {}]
  %s10 = inlined_call_operand.vmem [shape: f32[1,32], index: 10, kind: input, shape index: {}]
  %s11 = inlined_call_operand.vmem [shape: f32[1,32], index: 11, kind: input, shape index: {}]
  %s12 = inlined_call_operand.vmem [shape: f32[1,32], index: 12, kind: input, shape index: {}]
  %s13 = inlined_call_operand.hbm [shape: f32[2,8,32], index: 13, kind: output, shape index: {}]
  %s14 = sld [smem:[#allocation0]]
  $region89: #{tpu_custom_call.1} parent=0
    _
  %s16 = ssub.s32 1, %s14
  %s17 = scalar_select 0, %s16, %s14
  $region1: #{tpu_custom_call.1} parent=0
    #allocation2 [shape = 'u8[8192]{0}', space=vmem, size = 0x2000, scoped, tag = 'input window, operand 5, single buffered']
    #allocation3 [shape = 's32[2]{0}', space=sflag, size = 0x8, scoped, tag = 'scoped memory for tpu_custom_call.1']
    #allocation4 [shape = 's32[2]{0}', space=sflag, size = 0x8, scoped, tag = 'scoped memory for tpu_custom_call.1']
    #allocation5 [shape = 'u8[8192]{0}', space=vmem, size = 0x2000, scoped, tag = 'output window, operand 0']
    %18 = vsyncpa [#allocation3], 0
    %19 = vsyncpa [#allocation4], 0
    %s20 = scalar_lea.sflag [#allocation4], 1
    %21 = vsyncpa %s20, 0
    loop: start=0, step=1, limit=4
    $region2: #{tpu_custom_call.1} parent=1 // loop_pre_header
      _
    $region3: #{tpu_custom_call.1} parent=1 // loop_header
      %s23 = sphi 0, %s27
      %p24 = scmp.ge.s32.totalorder %s23, 4
      %s33 = sphi 0, %s35
      %s36 = sphi 0, %s33
      %s37 = sphi 0, %s36
      %s53 = sphi 0, %s37
      %s57 = sphi 0, %s57
      %s59 = sphi 0, %s57
      %s60 = sphi 0, %s59
      %s74 = sphi 0, %s60
      %s78 = sphi 0, %s78
      %s80 = sphi 0, %s78
      %s81 = sphi 0, %s80
      %s95 = sphi 0, %s81
      %s99 = sphi 0, %s99
      %s101 = sphi 0, %s99
      %s102 = sphi 0, %s101
      %s116 = sphi 0, %s102
      %s120 = sphi 0, %s120
      %s122 = sphi 0, %s120
      %s123 = sphi 0, %s122
      %s137 = sphi 0, %s123
      %s141 = sphi 0, %s141
      %s143 = sphi 0, %s141
      %s144 = sphi 0, %s143
      %s158 = sphi 0, %s144
      %s162 = sphi 0, %s162
      %s164 = sphi 0, %s162
      %s165 = sphi 0, %s164
      %s179 = sphi 0, %s165
      %s183 = sphi 0, %s183
      %s185 = sphi 0, %s183
      %s186 = sphi 0, %s185
      %s200 = sphi 0, %s186
      %s204 = sphi 0, %s204
      %s206 = sphi 0, %s204
      %s207 = sphi 0, %s206
      %s221 = sphi 0, %s207
      %s225 = sphi 0, %s225
      %s227 = sphi 0, %s225
      %s228 = sphi 0, %s227
      %s242 = sphi 0, %s228
      %s246 = sphi 0, %s246
      %s248 = sphi 0, %s246
      %s249 = sphi 0, %s248
      %s263 = sphi 0, %s249
      %s267 = sphi 0, %s267
      %s269 = sphi 0, %s267
      %s270 = sphi 0, %s269
      %s284 = sphi 0, %s270
      %s288 = sphi 0, %s288
      %s290 = sphi 0, %s288
      %s291 = sphi 0, %s290
      %s305 = sphi 0, %s291
      %s311 = sphi 0, %s313
      %s314 = sphi 0, %s311
      %s315 = sphi 0, %s314
      %s331 = sphi 0, %s315
    $region4: #{tpu_custom_call.1} parent=1 // loop_header_branch
      %26 = sbr.rel (%p24) target = $region8
    $region5: #{tpu_custom_call.1} parent=1 // loop_body
      %s28 = ssub.s32 %s23, 1
      %s29 = ssub.s32 %s23, 2
      %s30 = sadd.s32 %s23, 1
      %s31 = ssub.s32 %s23, %s30
      %p32 = scmp.eq.s32.totalorder %s31, 0
      %s34 = sadd.s32 %s33, 1
      %s35 = scalar_select %p32, %s33, %s34
      %p38 = pneg %p32
      %p39 = scmp.eq.s32.totalorder %s23, 1
      %p40 = por %p38, %p39
      %p41 = scmp.ne.s32.totalorder %s33, %s36
      %p42 = scmp.eq.s32.totalorder %s23, 0
      %p43 = por %p41, %p42
      %p44 = scmp.ne.s32.totalorder %s33, %s36
      %p45 = scmp.eq.s32.totalorder %s28, 1
      %p46 = por %p44, %p45
      %p47 = scmp.ne.s32.totalorder %s36, %s37
      %p48 = scmp.eq.s32.totalorder %s28, 0
      %p49 = por %p47, %p48
      %p50 = scmp.ne.s32.totalorder %s36, %s37
      %p51 = scmp.eq.s32.totalorder %s29, 1
      %p52 = por %p50, %p51
      %p54 = scmp.ne.s32.totalorder %s37, %s53
      %p55 = scmp.eq.s32.totalorder %s29, 0
      %p56 = por %p54, %p55
      %s58 = sadd.s32 %s57, 1
      %p61 = scmp.eq.s32.totalorder %s23, 1
      %p62 = scmp.ne.s32.totalorder %s57, %s59
      %p63 = scmp.eq.s32.totalorder %s23, 0
      %p64 = por %p62, %p63
      %p65 = scmp.ne.s32.totalorder %s57, %s59
      %p66 = scmp.eq.s32.totalorder %s28, 1
      %p67 = por %p65, %p66
      %p68 = scmp.ne.s32.totalorder %s59, %s60
      %p69 = scmp.eq.s32.totalorder %s28, 0
      %p70 = por %p68, %p69
      %p71 = scmp.ne.s32.totalorder %s59, %s60
      %p72 = scmp.eq.s32.totalorder %s29, 1
      %p73 = por %p71, %p72
      %p75 = scmp.ne.s32.totalorder %s60, %s74
      %p76 = scmp.eq.s32.totalorder %s29, 0
      %p77 = por %p75, %p76
      %s79 = sadd.s32 %s78, 1
      %p82 = scmp.eq.s32.totalorder %s23, 1
      %p83 = scmp.ne.s32.totalorder %s78, %s80
      %p84 = scmp.eq.s32.totalorder %s23, 0
      %p85 = por %p83, %p84
      %p86 = scmp.ne.s32.totalorder %s78, %s80
      %p87 = scmp.eq.s32.totalorder %s28, 1
      %p88 = por %p86, %p87
      %p89 = scmp.ne.s32.totalorder %s80, %s81
      %p90 = scmp.eq.s32.totalorder %s28, 0
      %p91 = por %p89, %p90
      %p92 = scmp.ne.s32.totalorder %s80, %s81
      %p93 = scmp.eq.s32.totalorder %s29, 1
      %p94 = por %p92, %p93
      %p96 = scmp.ne.s32.totalorder %s81, %s95
      %p97 = scmp.eq.s32.totalorder %s29, 0
      %p98 = por %p96, %p97
      %s100 = sadd.s32 %s99, 1
      %p103 = scmp.eq.s32.totalorder %s23, 1
      %p104 = scmp.ne.s32.totalorder %s99, %s101
      %p105 = scmp.eq.s32.totalorder %s23, 0
      %p106 = por %p104, %p105
      %p107 = scmp.ne.s32.totalorder %s99, %s101
      %p108 = scmp.eq.s32.totalorder %s28, 1
      %p109 = por %p107, %p108
      %p110 = scmp.ne.s32.totalorder %s101, %s102
      %p111 = scmp.eq.s32.totalorder %s28, 0
      %p112 = por %p110, %p111
      %p113 = scmp.ne.s32.totalorder %s101, %s102
      %p114 = scmp.eq.s32.totalorder %s29, 1
      %p115 = por %p113, %p114
      %p117 = scmp.ne.s32.totalorder %s102, %s116
      %p118 = scmp.eq.s32.totalorder %s29, 0
      %p119 = por %p117, %p118
      %s121 = sadd.s32 %s120, 1
      %p124 = scmp.eq.s32.totalorder %s23, 1
      %p125 = scmp.ne.s32.totalorder %s120, %s122
      %p126 = scmp.eq.s32.totalorder %s23, 0
      %p127 = por %p125, %p126
      %p128 = scmp.ne.s32.totalorder %s120, %s122
      %p129 = scmp.eq.s32.totalorder %s28, 1
      %p130 = por %p128, %p129
      %p131 = scmp.ne.s32.totalorder %s122, %s123
      %p132 = scmp.eq.s32.totalorder %s28, 0
      %p133 = por %p131, %p132
      %p134 = scmp.ne.s32.totalorder %s122, %s123
      %p135 = scmp.eq.s32.totalorder %s29, 1
      %p136 = por %p134, %p135
      %p138 = scmp.ne.s32.totalorder %s123, %s137
      %p139 = scmp.eq.s32.totalorder %s29, 0
      %p140 = por %p138, %p139
      %s142 = sadd.s32 %s141, 1
      %p145 = scmp.eq.s32.totalorder %s23, 1
      %p146 = scmp.ne.s32.totalorder %s141, %s143
      %p147 = scmp.eq.s32.totalorder %s23, 0
      %p148 = por %p146, %p147
      %p149 = scmp.ne.s32.totalorder %s141, %s143
      %p150 = scmp.eq.s32.totalorder %s28, 1
      %p151 = por %p149, %p150
      %p152 = scmp.ne.s32.totalorder %s143, %s144
      %p153 = scmp.eq.s32.totalorder %s28, 0
      %p154 = por %p152, %p153
      %p155 = scmp.ne.s32.totalorder %s143, %s144
      %p156 = scmp.eq.s32.totalorder %s29, 1
      %p157 = por %p155, %p156
      %p159 = scmp.ne.s32.totalorder %s144, %s158
      %p160 = scmp.eq.s32.totalorder %s29, 0
      %p161 = por %p159, %p160
      %s163 = sadd.s32 %s162, 1
      %p166 = scmp.eq.s32.totalorder %s23, 1
      %p167 = scmp.ne.s32.totalorder %s162, %s164
      %p168 = scmp.eq.s32.totalorder %s23, 0
      %p169 = por %p167, %p168
      %p170 = scmp.ne.s32.totalorder %s162, %s164
      %p171 = scmp.eq.s32.totalorder %s28, 1
      %p172 = por %p170, %p171
      %p173 = scmp.ne.s32.totalorder %s164, %s165
      %p174 = scmp.eq.s32.totalorder %s28, 0
      %p175 = por %p173, %p174
      %p176 = scmp.ne.s32.totalorder %s164, %s165
      %p177 = scmp.eq.s32.totalorder %s29, 1
      %p178 = por %p176, %p177
      %p180 = scmp.ne.s32.totalorder %s165, %s179
      %p181 = scmp.eq.s32.totalorder %s29, 0
      %p182 = por %p180, %p181
      %s184 = sadd.s32 %s183, 1
      %p187 = scmp.eq.s32.totalorder %s23, 1
      %p188 = scmp.ne.s32.totalorder %s183, %s185
      %p189 = scmp.eq.s32.totalorder %s23, 0
      %p190 = por %p188, %p189
      %p191 = scmp.ne.s32.totalorder %s183, %s185
      %p192 = scmp.eq.s32.totalorder %s28, 1
      %p193 = por %p191, %p192
      %p194 = scmp.ne.s32.totalorder %s185, %s186
      %p195 = scmp.eq.s32.totalorder %s28, 0
      %p196 = por %p194, %p195
      %p197 = scmp.ne.s32.totalorder %s185, %s186
      %p198 = scmp.eq.s32.totalorder %s29, 1
      %p199 = por %p197, %p198
      %p201 = scmp.ne.s32.totalorder %s186, %s200
      %p202 = scmp.eq.s32.totalorder %s29, 0
      %p203 = por %p201, %p202
      %s205 = sadd.s32 %s204, 1
      %p208 = scmp.eq.s32.totalorder %s23, 1
      %p209 = scmp.ne.s32.totalorder %s204, %s206
      %p210 = scmp.eq.s32.totalorder %s23, 0
      %p211 = por %p209, %p210
      %p212 = scmp.ne.s32.totalorder %s204, %s206
      %p213 = scmp.eq.s32.totalorder %s28, 1
      %p214 = por %p212, %p213
      %p215 = scmp.ne.s32.totalorder %s206, %s207
      %p216 = scmp.eq.s32.totalorder %s28, 0
      %p217 = por %p215, %p216
      %p218 = scmp.ne.s32.totalorder %s206, %s207
      %p219 = scmp.eq.s32.totalorder %s29, 1
      %p220 = por %p218, %p219
      %p222 = scmp.ne.s32.totalorder %s207, %s221
      %p223 = scmp.eq.s32.totalorder %s29, 0
      %p224 = por %p222, %p223
      %s226 = sadd.s32 %s225, 1
      %p229 = scmp.eq.s32.totalorder %s23, 1
      %p230 = scmp.ne.s32.totalorder %s225, %s227
      %p231 = scmp.eq.s32.totalorder %s23, 0
      %p232 = por %p230, %p231
      %p233 = scmp.ne.s32.totalorder %s225, %s227
      %p234 = scmp.eq.s32.totalorder %s28, 1
      %p235 = por %p233, %p234
      %p236 = scmp.ne.s32.totalorder %s227, %s228
      %p237 = scmp.eq.s32.totalorder %s28, 0
      %p238 = por %p236, %p237
      %p239 = scmp.ne.s32.totalorder %s227, %s228
      %p240 = scmp.eq.s32.totalorder %s29, 1
      %p241 = por %p239, %p240
      %p243 = scmp.ne.s32.totalorder %s228, %s242
      %p244 = scmp.eq.s32.totalorder %s29, 0
      %p245 = por %p243, %p244
      %s247 = sadd.s32 %s246, 1
      %p250 = scmp.eq.s32.totalorder %s23, 1
      %p251 = scmp.ne.s32.totalorder %s246, %s248
      %p252 = scmp.eq.s32.totalorder %s23, 0
      %p253 = por %p251, %p252
      %p254 = scmp.ne.s32.totalorder %s246, %s248
      %p255 = scmp.eq.s32.totalorder %s28, 1
      %p256 = por %p254, %p255
      %p257 = scmp.ne.s32.totalorder %s248, %s249
      %p258 = scmp.eq.s32.totalorder %s28, 0
      %p259 = por %p257, %p258
      %p260 = scmp.ne.s32.totalorder %s248, %s249
      %p261 = scmp.eq.s32.totalorder %s29, 1
      %p262 = por %p260, %p261
      %p264 = scmp.ne.s32.totalorder %s249, %s263
      %p265 = scmp.eq.s32.totalorder %s29, 0
      %p266 = por %p264, %p265
      %s268 = sadd.s32 %s267, 1
      %p271 = scmp.eq.s32.totalorder %s23, 1
      %p272 = scmp.ne.s32.totalorder %s267, %s269
      %p273 = scmp.eq.s32.totalorder %s23, 0
      %p274 = por %p272, %p273
      %p275 = scmp.ne.s32.totalorder %s267, %s269
      %p276 = scmp.eq.s32.totalorder %s28, 1
      %p277 = por %p275, %p276
      %p278 = scmp.ne.s32.totalorder %s269, %s270
      %p279 = scmp.eq.s32.totalorder %s28, 0
      %p280 = por %p278, %p279
      %p281 = scmp.ne.s32.totalorder %s269, %s270
      %p282 = scmp.eq.s32.totalorder %s29, 1
      %p283 = por %p281, %p282
      %p285 = scmp.ne.s32.totalorder %s270, %s284
      %p286 = scmp.eq.s32.totalorder %s29, 0
      %p287 = por %p285, %p286
      %s289 = sadd.s32 %s288, 1
      %p292 = scmp.eq.s32.totalorder %s23, 1
      %p293 = scmp.ne.s32.totalorder %s288, %s290
      %p294 = scmp.eq.s32.totalorder %s23, 0
      %p295 = por %p293, %p294
      %p296 = scmp.ne.s32.totalorder %s288, %s290
      %p297 = scmp.eq.s32.totalorder %s28, 1
      %p298 = por %p296, %p297
      %p299 = scmp.ne.s32.totalorder %s290, %s291
      %p300 = scmp.eq.s32.totalorder %s28, 0
      %p301 = por %p299, %p300
      %p302 = scmp.ne.s32.totalorder %s290, %s291
      %p303 = scmp.eq.s32.totalorder %s29, 1
      %p304 = por %p302, %p303
      %p306 = scmp.ne.s32.totalorder %s291, %s305
      %p307 = scmp.eq.s32.totalorder %s29, 0
      %p308 = por %p306, %p307
      %s309 = ssub.s32 %s23, %s30
      %p310 = scmp.eq.s32.totalorder %s309, 0
      %s312 = sadd.s32 %s311, 1
      %s313 = scalar_select %p310, %s311, %s312
      %p316 = pneg %p310
      %p317 = scmp.eq.s32.totalorder %s23, 1
      %p318 = por %p316, %p317
      %p319 = scmp.ne.s32.totalorder %s311, %s314
      %p320 = scmp.eq.s32.totalorder %s23, 0
      %p321 = por %p319, %p320
      %p322 = scmp.ne.s32.totalorder %s311, %s314
      %p323 = scmp.eq.s32.totalorder %s28, 1
      %p324 = por %p322, %p323
      %p325 = scmp.ne.s32.totalorder %s314, %s315
      %p326 = scmp.eq.s32.totalorder %s28, 0
      %p327 = por %p325, %p326
      %p328 = scmp.ne.s32.totalorder %s314, %s315
      %p329 = scmp.eq.s32.totalorder %s29, 1
      %p330 = por %p328, %p329
      %p332 = scmp.ne.s32.totalorder %s315, %s331
      %p333 = scmp.eq.s32.totalorder %s29, 0
      %p334 = por %p332, %p333
      %p335 = scmp.le.s32.totalorder 1, %s23
      %p336 = scmp.lt.s32.totalorder %s23, 3
      %p337 = pnand %p335, %p336
      %p338 = pneg %p337
      // Predicated region
      $region9: #{tpu_custom_call.1} parent=5 // pred_check
        _
      $region10: #{tpu_custom_call.1} parent=5 // pred_check_branch
        %340 = sbr.rel (%p337) target = $region12
      $region11: #{tpu_custom_call.1} parent=5 // pred_region
        %s341 = ssub.s32 %s23, 1
        // Predicated region
        $region13: #{tpu_custom_call.1} parent=11 // pred_check
          %p342 = pneg %p70
        $region14: #{tpu_custom_call.1} parent=11 // pred_check_branch
          %344 = sbr.rel (%p342) target = $region16
        $region15: #{tpu_custom_call.1} parent=11 // pred_region
          _
        $region16: #{tpu_custom_call.1} parent=11 // pred_fallthru
          _
        // Predicated region
        $region17: #{tpu_custom_call.1} parent=11 // pred_check
          %p345 = pneg %p91
        $region18: #{tpu_custom_call.1} parent=11 // pred_check_branch
          %347 = sbr.rel (%p345) target = $region20
        $region19: #{tpu_custom_call.1} parent=11 // pred_region
          _
        $region20: #{tpu_custom_call.1} parent=11 // pred_fallthru
          _
        // Predicated region
        $region21: #{tpu_custom_call.1} parent=11 // pred_check
          %p348 = pneg %p112
        $region22: #{tpu_custom_call.1} parent=11 // pred_check_branch
          %350 = sbr.rel (%p348) target = $region24
        $region23: #{tpu_custom_call.1} parent=11 // pred_region
          _
        $region24: #{tpu_custom_call.1} parent=11 // pred_fallthru
          _
        // Predicated region
        $region25: #{tpu_custom_call.1} parent=11 // pred_check
          %p351 = pneg %p133
        $region26: #{tpu_custom_call.1} parent=11 // pred_check_branch
          %353 = sbr.rel (%p351) target = $region28
        $region27: #{tpu_custom_call.1} parent=11 // pred_region
          _
        $region28: #{tpu_custom_call.1} parent=11 // pred_fallthru
          _
        // Predicated region
        $region29: #{tpu_custom_call.1} parent=11 // pred_check
          %p354 = pneg %p154
        $region30: #{tpu_custom_call.1} parent=11 // pred_check_branch
          %356 = sbr.rel (%p354) target = $region32
        $region31: #{tpu_custom_call.1} parent=11 // pred_region
          %358 = vsyncadd [#allocation3], 0
          %s359 = sshll.u32 %s5, 4
          %s360 = int_to_ptr.hbm [resolvable:$true] %s359
          %s361 = sshll.u32 [#allocation2], 4
          %s362 = int_to_ptr.vmem [resolvable:$true] %s361
          %367 = dma.hbm_to_vmem [thread:$0]  %s360, 256, %s362, [#allocation3], 64, 64, 4
        $region32: #{tpu_custom_call.1} parent=11 // pred_fallthru
          _
        // Predicated region
        $region33: #{tpu_custom_call.1} parent=11 // pred_check
          %p368 = pneg %p175
        $region34: #{tpu_custom_call.1} parent=11 // pred_check_branch
          %370 = sbr.rel (%p368) target = $region36
        $region35: #{tpu_custom_call.1} parent=11 // pred_region
          _
        $region36: #{tpu_custom_call.1} parent=11 // pred_fallthru
          _
        // Predicated region
        $region37: #{tpu_custom_call.1} parent=11 // pred_check
          %p371 = pneg %p196
        $region38: #{tpu_custom_call.1} parent=11 // pred_check_branch
          %373 = sbr.rel (%p371) target = $region40
        $region39: #{tpu_custom_call.1} parent=11 // pred_region
          _
        $region40: #{tpu_custom_call.1} parent=11 // pred_fallthru
          _
        // Predicated region
        $region41: #{tpu_custom_call.1} parent=11 // pred_check
          %p374 = pneg %p217
        $region42: #{tpu_custom_call.1} parent=11 // pred_check_branch
          %376 = sbr.rel (%p374) target = $region44
        $region43: #{tpu_custom_call.1} parent=11 // pred_region
          _
        $region44: #{tpu_custom_call.1} parent=11 // pred_fallthru
          _
        // Predicated region
        $region45: #{tpu_custom_call.1} parent=11 // pred_check
          %p377 = pneg %p238
        $region46: #{tpu_custom_call.1} parent=11 // pred_check_branch
          %379 = sbr.rel (%p377) target = $region48
        $region47: #{tpu_custom_call.1} parent=11 // pred_region
          _
        $region48: #{tpu_custom_call.1} parent=11 // pred_fallthru
          _
        // Predicated region
        $region49: #{tpu_custom_call.1} parent=11 // pred_check
          %p380 = pneg %p259
        $region50: #{tpu_custom_call.1} parent=11 // pred_check_branch
          %382 = sbr.rel (%p380) target = $region52
        $region51: #{tpu_custom_call.1} parent=11 // pred_region
          _
        $region52: #{tpu_custom_call.1} parent=11 // pred_fallthru
          _
        // Predicated region
        $region53: #{tpu_custom_call.1} parent=11 // pred_check
          %p383 = pneg %p280
        $region54: #{tpu_custom_call.1} parent=11 // pred_check_branch
          %385 = sbr.rel (%p383) target = $region56
        $region55: #{tpu_custom_call.1} parent=11 // pred_region
          _
        $region56: #{tpu_custom_call.1} parent=11 // pred_fallthru
          _
        // Predicated region
        $region57: #{tpu_custom_call.1} parent=11 // pred_check
          %p386 = pneg %p301
        $region58: #{tpu_custom_call.1} parent=11 // pred_check_branch
          %388 = sbr.rel (%p386) target = $region60
        $region59: #{tpu_custom_call.1} parent=11 // pred_region
          _
        $region60: #{tpu_custom_call.1} parent=11 // pred_fallthru
          _
      $region12: #{tpu_custom_call.1} parent=5 // pred_fallthru
        _
      %p389 = scmp.lt.s32.totalorder %s23, 2
      // Predicated region
      $region61: #{tpu_custom_call.1} parent=5 // pred_check
        %p390 = pneg %p389
      $region62: #{tpu_custom_call.1} parent=5 // pred_check_branch
        %392 = sbr.rel (%p390) target = $region64
      $region63: #{tpu_custom_call.1} parent=5 // pred_region
        // Predicated region
        $region65: #{tpu_custom_call.1} parent=63 // pred_check
          %p393 = pneg %p43
        $region66: #{tpu_custom_call.1} parent=63 // pred_check_branch
          %395 = sbr.rel (%p393) target = $region68
        $region67: #{tpu_custom_call.1} parent=63 // pred_region
          %p396 = scmp.lt.s32.totalorder %s23, 1
          %s397 = scalar_select %p396, %s23, 1
          %s398 = smul.addr %s397, 8
          %s399 = scalar_lea.vmem %s0, %s398
        $region68: #{tpu_custom_call.1} parent=63 // pred_fallthru
          _
      $region64: #{tpu_custom_call.1} parent=5 // pred_fallthru
        _
      %p400 = scmp.le.s32.totalorder 1, %s23
      %p401 = scmp.lt.s32.totalorder %s23, 3
      %p402 = pnand %p400, %p401
      %p403 = pneg %p402
      // Predicated region
      $region69: #{tpu_custom_call.1} parent=5 // pred_check
        _
      $region70: #{tpu_custom_call.1} parent=5 // pred_check_branch
        %405 = sbr.rel (%p402) target = $region72
      $region71: #{tpu_custom_call.1} parent=5 // pred_region
        %s406 = ssub.s32 %s23, 1
        // Predicated region
        $region73: #{tpu_custom_call.1} parent=71 // pred_check
          %p407 = pneg %p154
        $region74: #{tpu_custom_call.1} parent=71 // pred_check_branch
          %409 = sbr.rel (%p407) target = $region76
        $region75: #{tpu_custom_call.1} parent=71 // pred_region
          %411 = dma.done [#allocation3], 256
        $region76: #{tpu_custom_call.1} parent=71 // pred_fallthru
          _
        %p412 = scmp.lt.s32.totalorder %s28, 1
        %s413 = scalar_select %p412, %s28, 1
        %s414 = smul.addr %s413, 8
        %s415 = scalar_lea.vmem %s0, %s414
        %p416 = pneg %p49
        %p417 = pneg %p46
        %p418 = pneg %p70
        %p419 = pneg %p67
        %p420 = pneg %p91
        %p421 = pneg %p88
        %p422 = pneg %p112
        %p423 = pneg %p109
        %p424 = pneg %p133
        %p425 = pneg %p130
        %p426 = pneg %p154
        %p427 = pneg %p151
        %p428 = pneg %p175
        %p429 = pneg %p172
        %p430 = pneg %p196
        %p431 = pneg %p193
        %p432 = pneg %p217
        %p433 = pneg %p214
        %p434 = pneg %p238
        %p435 = pneg %p235
        %p436 = pneg %p259
        %p437 = pneg %p256
        %p438 = pneg %p280
        %p439 = pneg %p277
        %p440 = pneg %p301
        %p441 = pneg %p298
        %p442 = pneg %p327
        %p443 = pneg %p324
        %s444 = sand.u32 %s314, 1
        %s445 = scalar_lea.sflag [#allocation4], %s444
        %s446 = sand.u32 %s314, 1
        %s447 = smul.addr %s446, 8
        %s448 = scalar_lea.vmem [#allocation5], %s447
        %p449 = scmp.lt.s32.totalorder %s28, 1
        %s450 = scalar_select %p449, %s28, 1
        %s451 = smul.addr %s450, 8
        %s452 = scalar_lea.vmem %s0, %s451
        %v454 = vld [vmem:[%s452] sm:$0xff]
        %v455 = vpack.c.bf16 %v454, %v454
        %v456 = vld [vmem:[%s1] sm:$0xf]
        %v457 = vld [vmem:[%s1 + $0x4] sm:$0xf]
        %v458 = vld [vmem:[%s1 + $0x8] sm:$0xf]
        %v459 = vld [vmem:[%s1 + $0xc] sm:$0xf]
        %v460 = vld [vmem:[%s2] sm:$0x1]
        %v462 = vperm.slane %v460, 0
        %v468 = vunpack.c.l.b16 %v456
        %v469 = vunpack.c.l.b16 %v457
        %v470 = vunpack.c.l.b16 %v458
        %v471 = vunpack.c.l.b16 %v459
        %v472 = vpack.c.b16 %v469, %v468
        %v473 = vpack.c.b16 %v471, %v470
        %vm476 = vcmask 261120
        %v478 = vsel %vm476, %v455, 0
        %480 = vmatpush.bf16.msra.mxu0 0
        %481 = vmatpush.bf16.msra.mxu0 0
        %482 = vmatpush.bf16.msra.mxu0 0
        %483 = vmatpush.bf16.msra.mxu0 0
        %484 = vmatpush.bf16.msra.mxu0 0
        %485 = vmatpush.bf16.msra.mxu0 0
        %486 = vmatpush.bf16.msra.mxu0 %v473
        %487 = vmatpush.bf16.msra.mxu0 %v472
        %488 = vmatmul.bf16.gmra.mxu0 %v478
        %v489 = vpop.f32.mrf.mxu0
        %v490 = vadd.f32 %v462, %v489
        %v491 = vpop.f32.mrf.mxu0
        %492 = vdwg.mxu0
        %v493 = vpack.c.bf16 %v490, %v490
        %v495 = vunpack.c.l.b16 %v493
        %v496 = vpack.c.b16 %v495, %v495
        %497 = vrot.lane.b32.xlu0 %v496, 96
        %v498 = vpop.permute.xlu0 %497
        %vm499 = vcmask 64512
        %v501 = vsel %vm499, %v493, 0
        %v504 = vsel %vm499, %v498, 0
        %506 = vmatpush.bf16.xpose.msra.mxu0 0
        %507 = vmatpush.bf16.xpose.msra.mxu0 0
        %508 = vmatpush.bf16.xpose.msra.mxu0 0
        %509 = vmatpush.bf16.xpose.msra.mxu0 0
        %510 = vmatpush.bf16.xpose.msra.mxu0 0
        %511 = vmatpush.bf16.xpose.msra.mxu0 0
        %512 = vmatpush.bf16.xpose.msra.mxu0 0
        %513 = vmatpush.bf16.xpose.msra.mxu0 %v504
        %514 = vmatmul.bf16.gmra.mxu0 %v501
        %v515 = vpop.f32.mrf.mxu0
        %v516 = vadd.f32 0.0, %v515
        %v517 = vpop.f32.mrf.mxu0
        %518 = vdwg.mxu0
        %v519 = vsel %vm499, %v516, -inf
        %520 = vmax.xlane.f32.xlu0 %v519
        %v521 = vpop.xlane.xlu0 %520
        %v522 = vsub.f32 %v516, %v521
        %v523 = vmul.f32 %v522, 1.442695
        %v524 = vpow.pop %v523
        %v525 = vsel %vm499, %v524, 0.0
        %526 = vadd.xlane.f32.xlu0 %v525
        %v527 = vpop.xlane.xlu0 %526
        %v528 = vrcp.pop %v527
        %v529 = vmul.f32 %v524, %v528
        %v530 = vpack.c.bf16 %v529, %v529
        %531 = vrot.lane.b32.xlu0 %v496, 64
        %v532 = vpop.permute.xlu0 %531
        %v534 = vsel %vm499, %v530, 0
        %vm536 = vcmask 1043456
        %v538 = vsel %vm536, %v532, 0
        %540 = vmatpush.bf16.msra.mxu0 0
        %541 = vmatpush.bf16.msra.mxu0 0
        %542 = vmatpush.bf16.msra.mxu0 0
        %543 = vmatpush.bf16.msra.mxu0 0
        %544 = vmatpush.bf16.msra.mxu0 0
        %545 = vmatpush.bf16.msra.mxu0 0
        %546 = vmatpush.bf16.msra.mxu0 0
        %547 = vmatpush.bf16.msra.mxu0 %v538
        %548 = vmatmul.bf16.gmra.mxu0 %v534
        %v549 = vpop.f32.mrf.mxu0
        %v550 = vadd.f32 0.0, %v549
        %v551 = vpop.f32.mrf.mxu0
        %552 = vdwg.mxu0
        %v553 = vpack.c.bf16 %v550, %v550
        %554 = vrot.lane.b32.xlu0 %v496, 120
        %v555 = vpop.permute.xlu0 %554
        %556 = vrot.lane.b32.xlu0 %v496, 88
        %v557 = vpop.permute.xlu0 %556
        %v559 = vsel %vm499, %v555, 0
        %v562 = vsel %vm499, %v557, 0
        %564 = vmatpush.bf16.xpose.msra.mxu0 0
        %565 = vmatpush.bf16.xpose.msra.mxu0 0
        %566 = vmatpush.bf16.xpose.msra.mxu0 0
        %567 = vmatpush.bf16.xpose.msra.mxu0 0
        %568 = vmatpush.bf16.xpose.msra.mxu0 0
        %569 = vmatpush.bf16.xpose.msra.mxu0 0
        %570 = vmatpush.bf16.xpose.msra.mxu0 0
        %571 = vmatpush.bf16.xpose.msra.mxu0 %v562
        %572 = vmatmul.bf16.gmra.mxu0 %v559
        %v573 = vpop.f32.mrf.mxu0
        %v574 = vadd.f32 0.0, %v573
        %v575 = vpop.f32.mrf.mxu0
        %576 = vdwg.mxu0
        %v577 = vsel %vm499, %v574, -inf
        %578 = vmax.xlane.f32.xlu0 %v577
        %v579 = vpop.xlane.xlu0 %578
        %v580 = vsub.f32 %v574, %v579
        %v581 = vmul.f32 %v580, 1.442695
        %v582 = vpow.pop %v581
        %v583 = vsel %vm499, %v582, 0.0
        %584 = vadd.xlane.f32.xlu0 %v583
        %v585 = vpop.xlane.xlu0 %584
        %v586 = vrcp.pop %v585
        %v587 = vmul.f32 %v582, %v586
        %v588 = vpack.c.bf16 %v587, %v587
        %589 = vrot.lane.b32.xlu0 %v496, 56
        %v590 = vpop.permute.xlu0 %589
        %v592 = vsel %vm499, %v588, 0
        %v595 = vsel %vm536, %v590, 0
        %597 = vmatpush.bf16.msra.mxu0 0
        %598 = vmatpush.bf16.msra.mxu0 0
        %599 = vmatpush.bf16.msra.mxu0 0
        %600 = vmatpush.bf16.msra.mxu0 0
        %601 = vmatpush.bf16.msra.mxu0 0
        %602 = vmatpush.bf16.msra.mxu0 0
        %603 = vmatpush.bf16.msra.mxu0 0
        %604 = vmatpush.bf16.msra.mxu0 %v595
        %605 = vmatmul.bf16.gmra.mxu0 %v592
        %v606 = vpop.f32.mrf.mxu0
        %v607 = vadd.f32 0.0, %v606
        %v608 = vpop.f32.mrf.mxu0
        %609 = vdwg.mxu0
        %v610 = vpack.c.bf16 %v607, %v607
        %611 = vrot.lane.b32.xlu0 %v496, 112
        %v612 = vpop.permute.xlu0 %611
        %613 = vrot.lane.b32.xlu0 %v496, 80
        %v614 = vpop.permute.xlu0 %613
        %v616 = vsel %vm499, %v612, 0
        %v619 = vsel %vm499, %v614, 0
        %621 = vmatpush.bf16.xpose.msra.mxu0 0
        %622 = vmatpush.bf16.xpose.msra.mxu0 0
        %623 = vmatpush.bf16.xpose.msra.mxu0 0
        %624 = vmatpush.bf16.xpose.msra.mxu0 0
        %625 = vmatpush.bf16.xpose.msra.mxu0 0
        %626 = vmatpush.bf16.xpose.msra.mxu0 0
        %627 = vmatpush.bf16.xpose.msra.mxu0 0
        %628 = vmatpush.bf16.xpose.msra.mxu0 %v619
        %629 = vmatmul.bf16.gmra.mxu0 %v616
        %v630 = vpop.f32.mrf.mxu0
        %v631 = vadd.f32 0.0, %v630
        %v632 = vpop.f32.mrf.mxu0
        %633 = vdwg.mxu0
        %v634 = vsel %vm499, %v631, -inf
        %635 = vmax.xlane.f32.xlu0 %v634
        %v636 = vpop.xlane.xlu0 %635
        %v637 = vsub.f32 %v631, %v636
        %v638 = vmul.f32 %v637, 1.442695
        %v639 = vpow.pop %v638
        %v640 = vsel %vm499, %v639, 0.0
        %641 = vadd.xlane.f32.xlu0 %v640
        %v642 = vpop.xlane.xlu0 %641
        %v643 = vrcp.pop %v642
        %v644 = vmul.f32 %v639, %v643
        %v645 = vpack.c.bf16 %v644, %v644
        %646 = vrot.lane.b32.xlu0 %v496, 48
        %v647 = vpop.permute.xlu0 %646
        %v649 = vsel %vm499, %v645, 0
        %v652 = vsel %vm536, %v647, 0
        %654 = vmatpush.bf16.msra.mxu0 0
        %655 = vmatpush.bf16.msra.mxu0 0
        %656 = vmatpush.bf16.msra.mxu0 0
        %657 = vmatpush.bf16.msra.mxu0 0
        %658 = vmatpush.bf16.msra.mxu0 0
        %659 = vmatpush.bf16.msra.mxu0 0
        %660 = vmatpush.bf16.msra.mxu0 0
        %661 = vmatpush.bf16.msra.mxu0 %v652
        %662 = vmatmul.bf16.gmra.mxu0 %v649
        %v663 = vpop.f32.mrf.mxu0
        %v664 = vadd.f32 0.0, %v663
        %v665 = vpop.f32.mrf.mxu0
        %666 = vdwg.mxu0
        %v667 = vpack.c.bf16 %v664, %v664
        %668 = vrot.lane.b32.xlu0 %v496, 104
        %v669 = vpop.permute.xlu0 %668
        %670 = vrot.lane.b32.xlu0 %v496, 72
        %v671 = vpop.permute.xlu0 %670
        %v673 = vsel %vm499, %v669, 0
        %v676 = vsel %vm499, %v671, 0
        %678 = vmatpush.bf16.xpose.msra.mxu0 0
        %679 = vmatpush.bf16.xpose.msra.mxu0 0
        %680 = vmatpush.bf16.xpose.msra.mxu0 0
        %681 = vmatpush.bf16.xpose.msra.mxu0 0
        %682 = vmatpush.bf16.xpose.msra.mxu0 0
        %683 = vmatpush.bf16.xpose.msra.mxu0 0
        %684 = vmatpush.bf16.xpose.msra.mxu0 0
        %685 = vmatpush.bf16.xpose.msra.mxu0 %v676
        %686 = vmatmul.bf16.gmra.mxu0 %v673
        %v687 = vpop.f32.mrf.mxu0
        %v688 = vadd.f32 0.0, %v687
        %v689 = vpop.f32.mrf.mxu0
        %690 = vdwg.mxu0
        %v691 = vsel %vm499, %v688, -inf
        %692 = vmax.xlane.f32.xlu0 %v691
        %v693 = vpop.xlane.xlu0 %692
        %v694 = vsub.f32 %v688, %v693
        %v695 = vmul.f32 %v694, 1.442695
        %v696 = vpow.pop %v695
        %v697 = vsel %vm499, %v696, 0.0
        %698 = vadd.xlane.f32.xlu0 %v697
        %v699 = vpop.xlane.xlu0 %698
        %v700 = vrcp.pop %v699
        %v701 = vmul.f32 %v696, %v700
        %v702 = vpack.c.bf16 %v701, %v701
        %703 = vrot.lane.b32.xlu0 %v496, 40
        %v704 = vpop.permute.xlu0 %703
        %v706 = vsel %vm499, %v702, 0
        %v709 = vsel %vm536, %v704, 0
        %711 = vmatpush.bf16.msra.mxu0 0
        %712 = vmatpush.bf16.msra.mxu0 0
        %713 = vmatpush.bf16.msra.mxu0 0
        %714 = vmatpush.bf16.msra.mxu0 0
        %715 = vmatpush.bf16.msra.mxu0 0
        %716 = vmatpush.bf16.msra.mxu0 0
        %717 = vmatpush.bf16.msra.mxu0 0
        %718 = vmatpush.bf16.msra.mxu0 %v709
        %719 = vmatmul.bf16.gmra.mxu0 %v706
        %v720 = vpop.f32.mrf.mxu0
        %v721 = vadd.f32 0.0, %v720
        %v722 = vpop.f32.mrf.mxu0
        %723 = vdwg.mxu0
        %v724 = vpack.c.bf16 %v721, %v721
        %v726 = vunpack.c.l.b16 %v610
        %v727 = vpack.c.b16 %v726, %v726
        %728 = vrot.lane.b32.xlu0 %v727, 8
        %v729 = vpop.permute.xlu0 %728
        %v731 = vunpack.c.l.b16 %v667
        %v732 = vpack.c.b16 %v731, %v731
        %733 = vrot.lane.b32.xlu0 %v732, 16
        %v734 = vpop.permute.xlu0 %733
        %v736 = vunpack.c.l.b16 %v724
        %v737 = vpack.c.b16 %v736, %v736
        %738 = vrot.lane.b32.xlu0 %v737, 24
        %v739 = vpop.permute.xlu0 %738
        %v742 = vsel %vm499, %v553, %v729
        %vm743 = vcmask 130048
        %v745 = vsel %vm743, %v742, %v734
        %vm746 = vcmask 195584
        %v748 = vsel %vm746, %v745, %v739
        %v749 = vld [vmem:[%s3] sm:$0xf]
        %v750 = vld [vmem:[%s3 + $0x4] sm:$0xf]
        %v751 = vld [vmem:[%s3 + $0x8] sm:$0xf]
        %v752 = vld [vmem:[%s3 + $0xc] sm:$0xf]
        %v753 = vld [vmem:[%s4] sm:$0x1]
        %v755 = vperm.slane %v753, 0
        %v761 = vunpack.c.l.b16 %v749
        %v762 = vunpack.c.l.b16 %v750
        %v763 = vunpack.c.l.b16 %v751
        %v764 = vunpack.c.l.b16 %v752
        %v765 = vpack.c.b16 %v762, %v761
        %v766 = vpack.c.b16 %v764, %v763
        %v769 = vsel %vm476, %v748, 0
        %771 = vmatpush.bf16.msra.mxu0 0
        %772 = vmatpush.bf16.msra.mxu0 0
        %773 = vmatpush.bf16.msra.mxu0 0
        %774 = vmatpush.bf16.msra.mxu0 0
        %775 = vmatpush.bf16.msra.mxu0 0
        %776 = vmatpush.bf16.msra.mxu0 0
        %777 = vmatpush.bf16.msra.mxu0 %v766
        %778 = vmatpush.bf16.msra.mxu0 %v765
        %779 = vmatmul.bf16.gmra.mxu0 %v769
        %v780 = vpop.f32.mrf.mxu0
        %v781 = vadd.f32 %v755, %v780
        %v782 = vpop.f32.mrf.mxu0
        %783 = vdwg.mxu0
        %v784 = vadd.f32 %v454, %v781
        %v785 = vld [vmem:[%s9] sm:$0x1]
        %v786 = vld [vmem:[%s10] sm:$0x1]
        %v787 = vsel %vm476, %v784, 0.0
        %788 = vadd.xlane.f32.xlu0 %v787
        %v789 = vpop.xlane.xlu0 %788
        %v790 = vrcp.pop 32.0
        %v791 = vmul.f32 32.0, %v790
        %v792 = vsub.f32 1.0, %v791
        %v793 = vmul.f32 %v790, %v792
        %v794 = vadd.f32 %v790, %v793
        %vm795 = vweird.f32 %v790
        %v796 = vsel %vm795, %v790, %v794
        %v797 = vmul.f32 %v789, %v796
        %v798 = vsub.f32 %v784, %v797
        %v799 = vmul.f32 %v798, %v798
        %v800 = vsel %vm476, %v799, 0.0
        %801 = vadd.xlane.f32.xlu0 %v800
        %v802 = vpop.xlane.xlu0 %801
        %v803 = vmul.f32 %v802, %v796
        %v804 = vadd.f32 %v803, 1e-05
        %v805 = vrsqrt.pop %v804
        %v806 = vmul.f32 %v805, %v804
        %v807 = vmul.f32 %v806, %v805
        %v808 = vmul.f32 0.5, %v807
        %v809 = vsub.f32 1.5, %v808
        %v810 = vmul.f32 %v805, %v809
        %vm811 = vweird.f32 %v804
        %vm812 = vweird.f32 %v805
        %vm813 = vmor %vm811, %vm812
        %v814 = vsel %vm813, %v805, %v810
        %v815 = vmul.f32 %v798, %v814
        %v817 = vperm.slane %v785, 0
        %v819 = vmul.f32 %v815, %v817
        %v821 = vperm.slane %v786, 0
        %v823 = vadd.f32 %v819, %v821
        %v824 = vpack.c.bf16 %v823, %v823
        %v825 = vld [vmem:[#allocation2] sm:$0xf]
        %v826 = vld [vmem:[#allocation2 + $0x4] sm:$0xf]
        %v827 = vld [vmem:[#allocation2 + $0x8] sm:$0xf]
        %v828 = vld [vmem:[#allocation2 + $0xc] sm:$0xf]
        %v829 = vld [vmem:[%s6] sm:$0x1]
        %v831 = vperm.slane %v829, 0
        %v837 = vunpack.c.l.b16 %v825
        %v838 = vunpack.c.l.b16 %v826
        %v839 = vunpack.c.l.b16 %v827
        %v840 = vunpack.c.l.b16 %v828
        %v841 = vpack.c.b16 %v838, %v837
        %v842 = vpack.c.b16 %v840, %v839
        %v846 = vsel %vm476, %v824, 0
        %848 = vmatpush.bf16.msra.mxu0 0
        %849 = vmatpush.bf16.msra.mxu0 0
        %850 = vmatpush.bf16.msra.mxu0 0
        %851 = vmatpush.bf16.msra.mxu0 0
        %852 = vmatpush.bf16.msra.mxu0 0
        %853 = vmatpush.bf16.msra.mxu0 0
        %854 = vmatpush.bf16.msra.mxu0 %v842
        %855 = vmatpush.bf16.msra.mxu0 %v841
        %856 = vmatmul.bf16.gmra.mxu0 %v846
        %v857 = vpop.f32.mrf.mxu0
        %v858 = vadd.f32 %v831, %v857
        %v859 = vpop.f32.mrf.mxu0
        %860 = vdwg.mxu0
        %v861 = vmax.f32 %v858, 0.0
        %v862 = vpack.c.bf16 %v861, %v861
        %v863 = vld [vmem:[%s7] sm:$0xf]
        %v864 = vld [vmem:[%s7 + $0x4] sm:$0xf]
        %v865 = vld [vmem:[%s7 + $0x8] sm:$0xf]
        %v866 = vld [vmem:[%s7 + $0xc] sm:$0xf]
        %v867 = vld [vmem:[%s7 + $0x10] sm:$0xf]
        %v868 = vld [vmem:[%s7 + $0x14] sm:$0xf]
        %v869 = vld [vmem:[%s7 + $0x18] sm:$0xf]
        %v870 = vld [vmem:[%s7 + $0x1c] sm:$0xf]
        %v871 = vld [vmem:[%s8] sm:$0x1]
        %v873 = vperm.slane %v871, 0
        %v883 = vunpack.c.l.b16 %v863
        %v884 = vunpack.c.l.b16 %v864
        %v885 = vunpack.c.l.b16 %v865
        %v886 = vunpack.c.l.b16 %v866
        %v887 = vunpack.c.l.b16 %v867
        %v888 = vunpack.c.l.b16 %v868
        %v889 = vunpack.c.l.b16 %v869
        %v890 = vunpack.c.l.b16 %v870
        %v891 = vpack.c.b16 %v884, %v883
        %v892 = vpack.c.b16 %v886, %v885
        %v893 = vpack.c.b16 %v888, %v887
        %v894 = vpack.c.b16 %v890, %v889
        %vm899 = vcmask 523264
        %v901 = vsel %vm899, %v862, 0
        %903 = vmatpush.bf16.msra.mxu0 0
        %904 = vmatpush.bf16.msra.mxu0 0
        %905 = vmatpush.bf16.msra.mxu0 0
        %906 = vmatpush.bf16.msra.mxu0 0
        %907 = vmatpush.bf16.msra.mxu0 %v894
        %908 = vmatpush.bf16.msra.mxu0 %v893
        %909 = vmatpush.bf16.msra.mxu0 %v892
        %910 = vmatpush.bf16.msra.mxu0 %v891
        %911 = vmatmul.bf16.gmra.mxu0 %v901
        %v912 = vpop.f32.mrf.mxu0
        %v913 = vadd.f32 %v873, %v912
        %v914 = vpop.f32.mrf.mxu0
        %915 = vdwg.mxu0
        %v916 = vadd.f32 %v823, %v913
        %v917 = vld [vmem:[%s11] sm:$0x1]
        %v918 = vld [vmem:[%s12] sm:$0x1]
        %v919 = vsel %vm476, %v916, 0.0
        %920 = vadd.xlane.f32.xlu0 %v919
        %v921 = vpop.xlane.xlu0 %920
        %v922 = vmul.f32 %v921, %v796
        %v923 = vsub.f32 %v916, %v922
        %v924 = vmul.f32 %v923, %v923
        %v925 = vsel %vm476, %v924, 0.0
        %926 = vadd.xlane.f32.xlu0 %v925
        %v927 = vpop.xlane.xlu0 %926
        %v928 = vmul.f32 %v927, %v796
        %v929 = vadd.f32 %v928, 1e-05
        %v930 = vrsqrt.pop %v929
        %v931 = vmul.f32 %v930, %v929
        %v932 = vmul.f32 %v931, %v930
        %v933 = vmul.f32 0.5, %v932
        %v934 = vsub.f32 1.5, %v933
        %v935 = vmul.f32 %v930, %v934
        %vm936 = vweird.f32 %v929
        %vm937 = vweird.f32 %v930
        %vm938 = vmor %vm936, %vm937
        %v939 = vsel %vm938, %v930, %v935
        %v940 = vmul.f32 %v923, %v939
        %v942 = vperm.slane %v917, 0
        %v944 = vmul.f32 %v940, %v942
        %v946 = vperm.slane %v918, 0
        %v948 = vadd.f32 %v944, %v946
        %949 = vst.msk [vmem:[%s448] sm:$0xff] %vm476, %v948
        %s950 = sand.u32 %s314, 1
        %s951 = scalar_lea.sflag [#allocation4], %s950
        %s952 = sand.u32 %s314, 1
        %s953 = smul.addr %s952, 8
        %s954 = scalar_lea.vmem [#allocation5], %s953
        // Predicated region
        $region77: #{tpu_custom_call.1} parent=71 // pred_check
          %p955 = pneg %p324
        $region78: #{tpu_custom_call.1} parent=71 // pred_check_branch
          %957 = sbr.rel (%p955) target = $region80
        $region79: #{tpu_custom_call.1} parent=71 // pred_region
          %959 = vsyncadd %s951, 0
          %s960 = smul.addr %s28, 8
          %s961 = scalar_lea.hbm %s13, %s960
          %s963 = sshll.u32 %s954, 4
          %s964 = int_to_ptr.vmem [resolvable:$true] %s963
          %s965 = sshll.u32 %s961, 4
          %s966 = int_to_ptr.hbm [resolvable:$true] %s965
          %968 = dma.vmem_to_hbm [thread:$0]  %s964, 128, %s966, %s951
        $region80: #{tpu_custom_call.1} parent=71 // pred_fallthru
          _
      $region72: #{tpu_custom_call.1} parent=5 // pred_fallthru
        _
      %p969 = scmp.le.s32.totalorder 2, %s23
      // Predicated region
      $region81: #{tpu_custom_call.1} parent=5 // pred_check
        %p970 = pneg %p969
      $region82: #{tpu_custom_call.1} parent=5 // pred_check_branch
        %972 = sbr.rel (%p970) target = $region84
      $region83: #{tpu_custom_call.1} parent=5 // pred_region
        %s973 = ssub.s32 %s23, 2
        // Predicated region
        $region85: #{tpu_custom_call.1} parent=83 // pred_check
          %p974 = pneg %p330
        $region86: #{tpu_custom_call.1} parent=83 // pred_check_branch
          %976 = sbr.rel (%p974) target = $region88
        $region87: #{tpu_custom_call.1} parent=83 // pred_region
          %s977 = sand.u32 %s315, 1
          %s978 = scalar_lea.sflag [#allocation4], %s977
          %s979 = sand.u32 %s315, 1
          %s980 = smul.addr %s979, 8
          %s981 = scalar_lea.vmem [#allocation5], %s980
          %983 = dma.done %s978, 128
        $region88: #{tpu_custom_call.1} parent=83 // pred_fallthru
          _
      $region84: #{tpu_custom_call.1} parent=5 // pred_fallthru
        _
    $region6: #{tpu_custom_call.1} parent=1 // loop_footer
      %s27 = sadd.s32 1, %s23
    $region7: #{tpu_custom_call.1} parent=1 // loop_footer_branch
      %22 = sbr.rel target = $region3
    $region8: #{tpu_custom_call.1} parent=1 // loop_exit
      _
    %984 = vsyncpa [#allocation3], 1
    %s985 = scalar_lea.sflag [#allocation3], 1
    %986 = vsyncpa %s985, 1
    %987 = vsyncpa [#allocation4], 1
    %s988 = scalar_lea.sflag [#allocation4], 1
    %989 = vsyncpa %s988, 1

</llo_original>
